<compile_context>
chip_gen: v6e
topology: v6e:2x2x1
jax: 0.10.0
libtpu: 0.0.40
codegen_flags: <defaults>
</compile_context>

<pallas_src>
import functools

import jax
import jax.numpy as jnp
import numpy as np
from jax.experimental import pallas as pl
from jax.experimental.pallas import tpu as pltpu


def _bce(p, t):
    # torch.nn.BCELoss semantics: log outputs clamped to >= -100.
    log_p = jnp.maximum(jnp.log(p), -100.0)
    log_1mp = jnp.maximum(jnp.log(1.0 - p), -100.0)
    return -(t * log_p + (1.0 - t) * log_1mp)


def elias_loss_kernel(topk_vals_ref, topk_inds_ref, sl_vals_ref, sl_inds_ref,
                      y_packed_ref, out_ref, *, numy, loss_lambda):
    topk_vals = topk_vals_ref[...]   # (B, K) f32 in (0, 1)
    topk_inds = topk_inds_ref[...]   # (B, K) i32
    sl_vals = sl_vals_ref[...]       # (B, S) f32 in (0, 1)
    sl_inds = sl_inds_ref[...]       # (B, S) i32
    y_packed = y_packed_ref[...]     # (B, 2J) i32: [y_inds | bitcast(y_vals)]

    B, K = topk_vals.shape
    S = sl_vals.shape[1]
    J = y_packed.shape[1] // 2
    k = min(J, S)

    y_inds = y_packed[:, :J]                                    # (B, J) i32
    y_vals = pltpu.bitcast(y_packed[:, J:2 * J], jnp.float32)   # (B, J) f32

    # j-invariant shortlist validity test, hoisted out of the label loop
    # (OR-over-j of (match & valid) == (OR-over-j of match) & valid).
    sl_valid = sl_inds < numy

    # ---- target construction (the torch.no_grad() loop over label slots) ----
    # J is a small static constant -> unrolled.  One lane broadcast of the
    # label index per slot, shared by the shortlist and topK compares.
    # (Tree-combine the merges only if J grows well beyond 8, per review.)
    share_bcast = K <= S
    topk_targets = jnp.zeros_like(topk_vals)
    sl_hit = jnp.zeros(sl_vals.shape, dtype=jnp.bool_)
    for j in range(J):
        yj_ind = y_inds[:, j:j + 1]            # (B, 1) i32
        yj_val = y_vals[:, j:j + 1]            # (B, 1) f32
        if share_bcast:
            yj_b = jnp.broadcast_to(yj_ind, (B, S))    # single lane broadcast
            sl_m = sl_inds == yj_b
            tk_m = topk_inds == yj_b[:, :K]
        else:
            sl_m = sl_inds == yj_ind
            tk_m = topk_inds == yj_ind
        sl_hit = jnp.logical_or(sl_hit, sl_m)
        topk_targets = jnp.where(tk_m, yj_val, topk_targets)  # last match wins

    sl_pos = jnp.logical_and(sl_hit, sl_valid)   # binary shortlist targets

    # ---- classification BCE, pre-scaled by 1/(B*K) ----
    cls_contrib = _bce(topk_vals, topk_targets) * (1.0 / (B * K))

    # ---- shortlist loss ----
    # torch: topk(k) of the binary targets, gather matching shortlist vals,
    # zero vals where target < 1e-5, BCE mean over B*k.  Equivalently: the
    # first k positives (index order; matches lax.top_k's lowest-index
    # tie-break — torch.topk tie order is unspecified) each contribute
    # -clamp(log(p), -100); every other selected slot contributes 0.
    #
    # Inclusive prefix count of positives along lanes via a log2(S)-step
    # shifted-add scan (static slice + zero-pad concat).  Stays on the idle
    # VPU/XLU; no (S,S) constant, no MXU, no extra HBM traffic.
    pos_f32 = jnp.where(sl_pos, 1.0, 0.0)
    cum_incl = pos_f32
    d = 1
    while d < S:
        shifted = jnp.concatenate(
            [jnp.zeros((B, d), jnp.float32), cum_incl[:, :S - d]], axis=1)
        cum_incl = cum_incl + shifted
        d *= 2
    # a slot is selected iff it is positive and among the first k positives
    selected_pos = jnp.logical_and(sl_pos, cum_incl <= k)
    log_sl = jnp.maximum(jnp.log(sl_vals), -100.0)
    sl_contrib = jnp.where(selected_pos, log_sl, 0.0) * (-loss_lambda / (B * k))

    # ---- reduction of both (pre-scaled) loss terms (XLU reduces are cheap;
    # no concatenate buffer) ----
    total = jnp.sum(cls_contrib) + jnp.sum(sl_contrib)
    out_ref[...] = jnp.full((1, 1), total, dtype=out_ref.dtype)


@functools.partial(jax.jit, static_argnames=("numy", "loss_lambda"))
def elias_loss(topk_vals, topk_inds, sl_vals, sl_inds, y_inds, y_vals,
               *, numy, loss_lambda):
    # Pack the two tiny label arrays into a single int32 input: each sub-KiB
    # input pays a fixed DMA issue cost larger than its transfer time.
    y_packed = jnp.concatenate(
        [y_inds.astype(jnp.int32),
         jax.lax.bitcast_convert_type(y_vals.astype(jnp.float32), jnp.int32)],
        axis=1)
    kernel = functools.partial(elias_loss_kernel, numy=numy,
                               loss_lambda=loss_lambda)
    vmem = pltpu.MemorySpace.VMEM
    out = pl.pallas_call(
        kernel,
        in_specs=[pl.BlockSpec(memory_space=vmem)] * 5,
        out_specs=pl.BlockSpec(memory_space=vmem),
        out_shape=jax.ShapeDtypeStruct((1, 1), jnp.float32),
    )(topk_vals, topk_inds, sl_vals, sl_inds, y_packed)
    return out[0, 0]


def elias_loss_ref(topk_vals, topk_inds, sl_vals, sl_inds, y_inds, y_vals,
                   *, numy, loss_lambda):
    """Pure-JAX reference mirroring the torch forward (topk + gather path)."""
    B, K = topk_vals.shape
    S = sl_vals.shape[1]
    J = y_inds.shape[1]
    topk_t = jnp.zeros_like(topk_vals)
    sl_t = jnp.zeros_like(sl_vals)
    for j in range(J):
        yj = y_inds[:, j:j + 1]
        topk_t = jnp.where(topk_inds == yj, y_vals[:, j:j + 1], topk_t)
        sl_t = jnp.where((sl_inds == yj) & (sl_inds < numy), 1.0, sl_t)
    loss_cls = jnp.mean(_bce(topk_vals, topk_t))
    k = min(J, S)
    pos_t, pos_idx = jax.lax.top_k(sl_t, k)          # lowest-index tie break
    pos_v = jnp.take_along_axis(sl_vals, pos_idx, axis=1)
    pos_v = jnp.where(pos_t < 1e-5, 0.0, pos_v)
    loss_sl = jnp.mean(_bce(pos_v, pos_t))
    return loss_cls + loss_lambda * loss_sl


if __name__ == "__main__":
    B, K, S, J = 8, 128, 256, 8        # batch, topK, shortlist size, labels/sample
    numy = 1000                        # args.numy
    loss_lambda = 0.5                  # args.loss_lambda

    key = jax.random.PRNGKey(0)
    k1, k2, k3, k4, k5, k6 = jax.random.split(key, 6)
    topk_vals = jax.nn.sigmoid(jax.random.normal(k1, (B, K), jnp.float32))
    topk_inds = jax.random.randint(k2, (B, K), 0, numy, dtype=jnp.int32)
    sl_vals = jax.nn.sigmoid(jax.random.normal(k3, (B, S), jnp.float32))
    # shortlist indices may contain padding entries >= numy
    sl_inds = jax.random.randint(k4, (B, S), 0, numy + 64, dtype=jnp.int32)
    y_inds = jax.random.randint(k5, (B, J), 0, numy, dtype=jnp.int32)
    y_vals = jax.nn.sigmoid(jax.random.normal(k6, (B, J), jnp.float32))

    # make sure some predictions actually hit ground-truth labels
    topk_inds = topk_inds.at[:, :J].set(y_inds)
    sl_inds = sl_inds.at[:, S // 2:S // 2 + J].set(y_inds)

    loss = elias_loss(topk_vals, topk_inds, sl_vals, sl_inds, y_inds, y_vals,
                      numy=numy, loss_lambda=loss_lambda)
    loss = jax.block_until_ready(loss)

    ref = elias_loss_ref(topk_vals, topk_inds, sl_vals, sl_inds, y_inds, y_vals,
                         numy=numy, loss_lambda=loss_lambda)
    np.testing.assert_allclose(np.asarray(loss), np.asarray(ref),
                               rtol=1e-3, atol=1e-3)
    print("KERNEL_OK")
</pallas_src>

<mosaic_0001>
module attributes {stable_mosaic.version = 11 : i64} {
  func.func @elias_loss_kernel(%arg0: memref<8x128xf32, #tpu.memory_space<vmem>>, %arg1: memref<8x128xi32, #tpu.memory_space<vmem>>, %arg2: memref<8x256xf32, #tpu.memory_space<vmem>>, %arg3: memref<8x256xi32, #tpu.memory_space<vmem>>, %arg4: memref<8x16xi32, #tpu.memory_space<vmem>>, %arg5: memref<1x1xf32, #tpu.memory_space<vmem>>) attributes {dimension_semantics = [], scalar_prefetch = 0 : i64, scratch_operands = 0 : i64, tpu.core_type = #tpu.core_type<tc>} {
    %c0 = arith.constant 0 : index
    %c0_0 = arith.constant 0 : index
    %0 = vector.load %arg0[%c0, %c0_0] : memref<8x128xf32, #tpu.memory_space<vmem>>, vector<8x128xf32>
    %c0_1 = arith.constant 0 : index
    %c0_2 = arith.constant 0 : index
    %1 = vector.load %arg1[%c0_1, %c0_2] : memref<8x128xi32, #tpu.memory_space<vmem>>, vector<8x128xi32>
    %c0_3 = arith.constant 0 : index
    %c0_4 = arith.constant 0 : index
    %2 = vector.load %arg2[%c0_3, %c0_4] : memref<8x256xf32, #tpu.memory_space<vmem>>, vector<8x256xf32>
    %c0_5 = arith.constant 0 : index
    %c0_6 = arith.constant 0 : index
    %3 = vector.load %arg3[%c0_5, %c0_6] : memref<8x256xi32, #tpu.memory_space<vmem>>, vector<8x256xi32>
    %c0_7 = arith.constant 0 : index
    %c0_8 = arith.constant 0 : index
    %4 = vector.load %arg4[%c0_7, %c0_8] : memref<8x16xi32, #tpu.memory_space<vmem>>, vector<8x16xi32>
    %5 = vector.extract_strided_slice %4 {offsets = [0, 0], sizes = [8, 8], strides = [1, 1]} : vector<8x16xi32> to vector<8x8xi32>
    %6 = vector.extract_strided_slice %4 {offsets = [0, 8], sizes = [8, 8], strides = [1, 1]} : vector<8x16xi32> to vector<8x8xi32>
    %7 = tpu.bitcast %6 : vector<8x8xi32> -> vector<8x8xf32>
    %c1000_i32 = arith.constant 1000 : i32
    %8 = vector.broadcast %c1000_i32 : i32 to vector<8x256xi32>
    %9 = arith.cmpi slt, %3, %8 : vector<8x256xi32>
    %cst = arith.constant 0.000000e+00 : f32
    %10 = vector.broadcast %cst : f32 to vector<8x128xf32>
    %false = arith.constant false
    %11 = vector.broadcast %false : i1 to vector<8x256xi1>
    %12 = vector.extract_strided_slice %5 {offsets = [0, 0], sizes = [8, 1], strides = [1, 1]} : vector<8x8xi32> to vector<8x1xi32>
    %13 = vector.extract_strided_slice %7 {offsets = [0, 0], sizes = [8, 1], strides = [1, 1]} : vector<8x8xf32> to vector<8x1xf32>
    %14 = vector.shape_cast %12 : vector<8x1xi32> to vector<8x1xi32>
    %15 = vector.broadcast %14 : vector<8x1xi32> to vector<8x256xi32>
    %16 = arith.cmpi eq, %3, %15 : vector<8x256xi32>
    %17 = vector.extract_strided_slice %15 {offsets = [0, 0], sizes = [8, 128], strides = [1, 1]} : vector<8x256xi32> to vector<8x128xi32>
    %18 = arith.cmpi eq, %1, %17 : vector<8x128xi32>
    %19 = arith.ori %11, %16 : vector<8x256xi1>
    %20 = vector.shape_cast %13 : vector<8x1xf32> to vector<8x1xf32>
    %21 = vector.broadcast %20 : vector<8x1xf32> to vector<8x128xf32>
    %22 = arith.select %18, %21, %10 : vector<8x128xi1>, vector<8x128xf32>
    %23 = vector.extract_strided_slice %5 {offsets = [0, 1], sizes = [8, 1], strides = [1, 1]} : vector<8x8xi32> to vector<8x1xi32>
    %24 = vector.extract_strided_slice %7 {offsets = [0, 1], sizes = [8, 1], strides = [1, 1]} : vector<8x8xf32> to vector<8x1xf32>
    %25 = vector.shape_cast %23 : vector<8x1xi32> to vector<8x1xi32>
    %26 = vector.broadcast %25 : vector<8x1xi32> to vector<8x256xi32>
    %27 = arith.cmpi eq, %3, %26 : vector<8x256xi32>
    %28 = vector.extract_strided_slice %26 {offsets = [0, 0], sizes = [8, 128], strides = [1, 1]} : vector<8x256xi32> to vector<8x128xi32>
    %29 = arith.cmpi eq, %1, %28 : vector<8x128xi32>
    %30 = arith.ori %19, %27 : vector<8x256xi1>
    %31 = vector.shape_cast %24 : vector<8x1xf32> to vector<8x1xf32>
    %32 = vector.broadcast %31 : vector<8x1xf32> to vector<8x128xf32>
    %33 = arith.select %29, %32, %22 : vector<8x128xi1>, vector<8x128xf32>
    %34 = vector.extract_strided_slice %5 {offsets = [0, 2], sizes = [8, 1], strides = [1, 1]} : vector<8x8xi32> to vector<8x1xi32>
    %35 = vector.extract_strided_slice %7 {offsets = [0, 2], sizes = [8, 1], strides = [1, 1]} : vector<8x8xf32> to vector<8x1xf32>
    %36 = vector.shape_cast %34 : vector<8x1xi32> to vector<8x1xi32>
    %37 = vector.broadcast %36 : vector<8x1xi32> to vector<8x256xi32>
    %38 = arith.cmpi eq, %3, %37 : vector<8x256xi32>
    %39 = vector.extract_strided_slice %37 {offsets = [0, 0], sizes = [8, 128], strides = [1, 1]} : vector<8x256xi32> to vector<8x128xi32>
    %40 = arith.cmpi eq, %1, %39 : vector<8x128xi32>
    %41 = arith.ori %30, %38 : vector<8x256xi1>
    %42 = vector.shape_cast %35 : vector<8x1xf32> to vector<8x1xf32>
    %43 = vector.broadcast %42 : vector<8x1xf32> to vector<8x128xf32>
    %44 = arith.select %40, %43, %33 : vector<8x128xi1>, vector<8x128xf32>
    %45 = vector.extract_strided_slice %5 {offsets = [0, 3], sizes = [8, 1], strides = [1, 1]} : vector<8x8xi32> to vector<8x1xi32>
    %46 = vector.extract_strided_slice %7 {offsets = [0, 3], sizes = [8, 1], strides = [1, 1]} : vector<8x8xf32> to vector<8x1xf32>
    %47 = vector.shape_cast %45 : vector<8x1xi32> to vector<8x1xi32>
    %48 = vector.broadcast %47 : vector<8x1xi32> to vector<8x256xi32>
    %49 = arith.cmpi eq, %3, %48 : vector<8x256xi32>
    %50 = vector.extract_strided_slice %48 {offsets = [0, 0], sizes = [8, 128], strides = [1, 1]} : vector<8x256xi32> to vector<8x128xi32>
    %51 = arith.cmpi eq, %1, %50 : vector<8x128xi32>
    %52 = arith.ori %41, %49 : vector<8x256xi1>
    %53 = vector.shape_cast %46 : vector<8x1xf32> to vector<8x1xf32>
    %54 = vector.broadcast %53 : vector<8x1xf32> to vector<8x128xf32>
    %55 = arith.select %51, %54, %44 : vector<8x128xi1>, vector<8x128xf32>
    %56 = vector.extract_strided_slice %5 {offsets = [0, 4], sizes = [8, 1], strides = [1, 1]} : vector<8x8xi32> to vector<8x1xi32>
    %57 = vector.extract_strided_slice %7 {offsets = [0, 4], sizes = [8, 1], strides = [1, 1]} : vector<8x8xf32> to vector<8x1xf32>
    %58 = vector.shape_cast %56 : vector<8x1xi32> to vector<8x1xi32>
    %59 = vector.broadcast %58 : vector<8x1xi32> to vector<8x256xi32>
    %60 = arith.cmpi eq, %3, %59 : vector<8x256xi32>
    %61 = vector.extract_strided_slice %59 {offsets = [0, 0], sizes = [8, 128], strides = [1, 1]} : vector<8x256xi32> to vector<8x128xi32>
    %62 = arith.cmpi eq, %1, %61 : vector<8x128xi32>
    %63 = arith.ori %52, %60 : vector<8x256xi1>
    %64 = vector.shape_cast %57 : vector<8x1xf32> to vector<8x1xf32>
    %65 = vector.broadcast %64 : vector<8x1xf32> to vector<8x128xf32>
    %66 = arith.select %62, %65, %55 : vector<8x128xi1>, vector<8x128xf32>
    %67 = vector.extract_strided_slice %5 {offsets = [0, 5], sizes = [8, 1], strides = [1, 1]} : vector<8x8xi32> to vector<8x1xi32>
    %68 = vector.extract_strided_slice %7 {offsets = [0, 5], sizes = [8, 1], strides = [1, 1]} : vector<8x8xf32> to vector<8x1xf32>
    %69 = vector.shape_cast %67 : vector<8x1xi32> to vector<8x1xi32>
    %70 = vector.broadcast %69 : vector<8x1xi32> to vector<8x256xi32>
    %71 = arith.cmpi eq, %3, %70 : vector<8x256xi32>
    %72 = vector.extract_strided_slice %70 {offsets = [0, 0], sizes = [8, 128], strides = [1, 1]} : vector<8x256xi32> to vector<8x128xi32>
    %73 = arith.cmpi eq, %1, %72 : vector<8x128xi32>
    %74 = arith.ori %63, %71 : vector<8x256xi1>
    %75 = vector.shape_cast %68 : vector<8x1xf32> to vector<8x1xf32>
    %76 = vector.broadcast %75 : vector<8x1xf32> to vector<8x128xf32>
    %77 = arith.select %73, %76, %66 : vector<8x128xi1>, vector<8x128xf32>
    %78 = vector.extract_strided_slice %5 {offsets = [0, 6], sizes = [8, 1], strides = [1, 1]} : vector<8x8xi32> to vector<8x1xi32>
    %79 = vector.extract_strided_slice %7 {offsets = [0, 6], sizes = [8, 1], strides = [1, 1]} : vector<8x8xf32> to vector<8x1xf32>
    %80 = vector.shape_cast %78 : vector<8x1xi32> to vector<8x1xi32>
    %81 = vector.broadcast %80 : vector<8x1xi32> to vector<8x256xi32>
    %82 = arith.cmpi eq, %3, %81 : vector<8x256xi32>
    %83 = vector.extract_strided_slice %81 {offsets = [0, 0], sizes = [8, 128], strides = [1, 1]} : vector<8x256xi32> to vector<8x128xi32>
    %84 = arith.cmpi eq, %1, %83 : vector<8x128xi32>
    %85 = arith.ori %74, %82 : vector<8x256xi1>
    %86 = vector.shape_cast %79 : vector<8x1xf32> to vector<8x1xf32>
    %87 = vector.broadcast %86 : vector<8x1xf32> to vector<8x128xf32>
    %88 = arith.select %84, %87, %77 : vector<8x128xi1>, vector<8x128xf32>
    %89 = vector.extract_strided_slice %5 {offsets = [0, 7], sizes = [8, 1], strides = [1, 1]} : vector<8x8xi32> to vector<8x1xi32>
    %90 = vector.extract_strided_slice %7 {offsets = [0, 7], sizes = [8, 1], strides = [1, 1]} : vector<8x8xf32> to vector<8x1xf32>
    %91 = vector.shape_cast %89 : vector<8x1xi32> to vector<8x1xi32>
    %92 = vector.broadcast %91 : vector<8x1xi32> to vector<8x256xi32>
    %93 = arith.cmpi eq, %3, %92 : vector<8x256xi32>
    %94 = vector.extract_strided_slice %92 {offsets = [0, 0], sizes = [8, 128], strides = [1, 1]} : vector<8x256xi32> to vector<8x128xi32>
    %95 = arith.cmpi eq, %1, %94 : vector<8x128xi32>
    %96 = arith.ori %85, %93 : vector<8x256xi1>
    %97 = vector.shape_cast %90 : vector<8x1xf32> to vector<8x1xf32>
    %98 = vector.broadcast %97 : vector<8x1xf32> to vector<8x128xf32>
    %99 = arith.select %95, %98, %88 : vector<8x128xi1>, vector<8x128xf32>
    %100 = arith.andi %96, %9 : vector<8x256xi1>
    %101 = math.log %0 : vector<8x128xf32>
    %cst_9 = arith.constant -1.000000e+02 : f32
    %102 = vector.broadcast %cst_9 : f32 to vector<8x128xf32>
    %103 = arith.maximumf %101, %102 : vector<8x128xf32>
    %cst_10 = arith.constant 1.000000e+00 : f32
    %104 = vector.broadcast %cst_10 : f32 to vector<8x128xf32>
    %105 = arith.subf %104, %0 : vector<8x128xf32>
    %106 = math.log %105 : vector<8x128xf32>
    %cst_11 = arith.constant -1.000000e+02 : f32
    %107 = vector.broadcast %cst_11 : f32 to vector<8x128xf32>
    %108 = arith.maximumf %106, %107 : vector<8x128xf32>
    %109 = arith.mulf %99, %103 : vector<8x128xf32>
    %cst_12 = arith.constant 1.000000e+00 : f32
    %110 = vector.broadcast %cst_12 : f32 to vector<8x128xf32>
    %111 = arith.subf %110, %99 : vector<8x128xf32>
    %112 = arith.mulf %111, %108 : vector<8x128xf32>
    %113 = arith.addf %109, %112 : vector<8x128xf32>
    %cst_13 = arith.constant 0.000000e+00 : f32
    %114 = vector.broadcast %cst_13 : f32 to vector<8x128xf32>
    %115 = arith.subf %114, %113 : vector<8x128xf32>
    %cst_14 = arith.constant 9.765625E-4 : f32
    %116 = vector.broadcast %cst_14 : f32 to vector<8x128xf32>
    %117 = arith.mulf %115, %116 : vector<8x128xf32>
    %cst_15 = arith.constant 1.000000e+00 : f32
    %cst_16 = arith.constant 0.000000e+00 : f32
    %118 = vector.broadcast %cst_15 : f32 to vector<8x256xf32>
    %119 = vector.broadcast %cst_16 : f32 to vector<8x256xf32>
    %120 = arith.select %100, %118, %119 : vector<8x256xi1>, vector<8x256xf32>
    %cst_17 = arith.constant 0.000000e+00 : f32
    %121 = vector.broadcast %cst_17 : f32 to vector<8x1xf32>
    %122 = vector.extract_strided_slice %120 {offsets = [0, 0], sizes = [8, 255], strides = [1, 1]} : vector<8x256xf32> to vector<8x255xf32>
    %123 = tpu.concatenate %121, %122 in 1 : vector<8x1xf32>, vector<8x255xf32> -> vector<8x256xf32>
    %124 = arith.addf %120, %123 : vector<8x256xf32>
    %cst_18 = arith.constant 0.000000e+00 : f32
    %125 = vector.broadcast %cst_18 : f32 to vector<8x2xf32>
    %126 = vector.extract_strided_slice %124 {offsets = [0, 0], sizes = [8, 254], strides = [1, 1]} : vector<8x256xf32> to vector<8x254xf32>
    %127 = tpu.concatenate %125, %126 in 1 : vector<8x2xf32>, vector<8x254xf32> -> vector<8x256xf32>
    %128 = arith.addf %124, %127 : vector<8x256xf32>
    %cst_19 = arith.constant 0.000000e+00 : f32
    %129 = vector.broadcast %cst_19 : f32 to vector<8x4xf32>
    %130 = vector.extract_strided_slice %128 {offsets = [0, 0], sizes = [8, 252], strides = [1, 1]} : vector<8x256xf32> to vector<8x252xf32>
    %131 = tpu.concatenate %129, %130 in 1 : vector<8x4xf32>, vector<8x252xf32> -> vector<8x256xf32>
    %132 = arith.addf %128, %131 : vector<8x256xf32>
    %cst_20 = arith.constant 0.000000e+00 : f32
    %133 = vector.broadcast %cst_20 : f32 to vector<8x8xf32>
    %134 = vector.extract_strided_slice %132 {offsets = [0, 0], sizes = [8, 248], strides = [1, 1]} : vector<8x256xf32> to vector<8x248xf32>
    %135 = tpu.concatenate %133, %134 in 1 : vector<8x8xf32>, vector<8x248xf32> -> vector<8x256xf32>
    %136 = arith.addf %132, %135 : vector<8x256xf32>
    %cst_21 = arith.constant 0.000000e+00 : f32
    %137 = vector.broadcast %cst_21 : f32 to vector<8x16xf32>
    %138 = vector.extract_strided_slice %136 {offsets = [0, 0], sizes = [8, 240], strides = [1, 1]} : vector<8x256xf32> to vector<8x240xf32>
    %139 = tpu.concatenate %137, %138 in 1 : vector<8x16xf32>, vector<8x240xf32> -> vector<8x256xf32>
    %140 = arith.addf %136, %139 : vector<8x256xf32>
    %cst_22 = arith.constant 0.000000e+00 : f32
    %141 = vector.broadcast %cst_22 : f32 to vector<8x32xf32>
    %142 = vector.extract_strided_slice %140 {offsets = [0, 0], sizes = [8, 224], strides = [1, 1]} : vector<8x256xf32> to vector<8x224xf32>
    %143 = tpu.concatenate %141, %142 in 1 : vector<8x32xf32>, vector<8x224xf32> -> vector<8x256xf32>
    %144 = arith.addf %140, %143 : vector<8x256xf32>
    %cst_23 = arith.constant 0.000000e+00 : f32
    %145 = vector.broadcast %cst_23 : f32 to vector<8x64xf32>
    %146 = vector.extract_strided_slice %144 {offsets = [0, 0], sizes = [8, 192], strides = [1, 1]} : vector<8x256xf32> to vector<8x192xf32>
    %147 = tpu.concatenate %145, %146 in 1 : vector<8x64xf32>, vector<8x192xf32> -> vector<8x256xf32>
    %148 = arith.addf %144, %147 : vector<8x256xf32>
    %cst_24 = arith.constant 0.000000e+00 : f32
    %149 = vector.broadcast %cst_24 : f32 to vector<8x128xf32>
    %150 = vector.extract_strided_slice %148 {offsets = [0, 0], sizes = [8, 128], strides = [1, 1]} : vector<8x256xf32> to vector<8x128xf32>
    %151 = tpu.concatenate %149, %150 in 1 : vector<8x128xf32>, vector<8x128xf32> -> vector<8x256xf32>
    %152 = arith.addf %148, %151 : vector<8x256xf32>
    %cst_25 = arith.constant 8.000000e+00 : f32
    %153 = vector.broadcast %cst_25 : f32 to vector<8x256xf32>
    %154 = arith.cmpf ole, %152, %153 : vector<8x256xf32>
    %155 = arith.andi %100, %154 : vector<8x256xi1>
    %156 = math.log %2 : vector<8x256xf32>
    %cst_26 = arith.constant -1.000000e+02 : f32
    %157 = vector.broadcast %cst_26 : f32 to vector<8x256xf32>
    %158 = arith.maximumf %156, %157 : vector<8x256xf32>
    %cst_27 = arith.constant 0.000000e+00 : f32
    %159 = vector.broadcast %cst_27 : f32 to vector<8x256xf32>
    %160 = arith.select %155, %158, %159 : vector<8x256xi1>, vector<8x256xf32>
    %cst_28 = arith.constant -7.812500e-03 : f32
    %161 = vector.broadcast %cst_28 : f32 to vector<8x256xf32>
    %162 = arith.mulf %160, %161 : vector<8x256xf32>
    %163 = vector.shape_cast %117 : vector<8x128xf32> to vector<1x8x128xf32>
    %cst_29 = arith.constant dense<0.000000e+00> : vector<1xf32>
    %164 = vector.multi_reduction <add>, %163, %cst_29 [1, 2] : vector<1x8x128xf32> to vector<1xf32>
    %165 = vector.shape_cast %164 : vector<1xf32> to vector<1x1x1xf32>
    %166 = vector.extract %165[0, 0, 0] : f32 from vector<1x1x1xf32>
    %167 = vector.shape_cast %162 : vector<8x256xf32> to vector<1x8x256xf32>
    %cst_30 = arith.constant dense<0.000000e+00> : vector<1xf32>
    %168 = vector.multi_reduction <add>, %167, %cst_30 [1, 2] : vector<1x8x256xf32> to vector<1xf32>
    %169 = vector.shape_cast %168 : vector<1xf32> to vector<1x1x1xf32>
    %170 = vector.extract %169[0, 0, 0] : f32 from vector<1x1x1xf32>
    %171 = arith.addf %166, %170 : f32
    %172 = vector.broadcast %171 : f32 to vector<1x1xf32>
    %c0_31 = arith.constant 0 : index
    %c0_32 = arith.constant 0 : index
    %173 = vector.load %arg5[%c0_31, %c0_32] : memref<1x1xf32, #tpu.memory_space<vmem>>, vector<1x1xf32>
    tpu.vector_store %arg5[%c0_31, %c0_32], %172 {strides = array<i32>} : memref<1x1xf32, #tpu.memory_space<vmem>>, vector<1x1xf32>,
    return
  }
}

</mosaic_0001>

<llo_original>
// kernel: elias_loss.1
$region0: #{elias_loss.1}
  #allocation0 [shape = 'u32[]', space=smem, size = 0x4, offset = 0x4, fixed_abs, tag = 'smem constant byte address 0x4 - core index']
  #allocation1 [shape = 'u32[144,128]{1,0:T(1,128)}', space=vmem, size = 0x12000, scoped, tag = 'internal scratch']
  %s0 = inlined_call_operand.vmem [shape: f32[8,128], index: 0, kind: input, shape index: {}]
  %s1 = inlined_call_operand.hbm [shape: s32[8,128], index: 1, kind: input, shape index: {}]
  %s2 = inlined_call_operand.vmem [shape: f32[8,256], index: 2, kind: input, shape index: {}]
  %s3 = inlined_call_operand.vmem [shape: s32[8,256], index: 3, kind: input, shape index: {}]
  %s4 = inlined_call_operand.vmem [shape: s32[8,16], index: 4, kind: input, shape index: {}]
  %s5 = inlined_call_operand.hbm [shape: f32[1,1], index: 5, kind: output, shape index: {}]
  %s6 = sld [smem:[#allocation0]]
  $region34: #{elias_loss.1} parent=0
    _
  %s8 = ssub.s32 1, %s6
  %s9 = scalar_select 0, %s8, %s6
  $region1: #{elias_loss.1} parent=0
    #allocation2 [shape = 'u8[4096]{0}', space=vmem, size = 0x1000, scoped, tag = 'input window, operand 1, single buffered']
    #allocation3 [shape = 's32[1]{0}', space=sflag, size = 0x4, scoped, tag = 'scoped memory for elias_loss.1']
    #allocation4 [shape = 's32[1]{0}', space=sflag, size = 0x4, scoped, tag = 'scoped memory for elias_loss.1']
    #allocation5 [shape = 'u8[512]{0}', space=vmem, size = 0x400, scoped, tag = 'output window, operand 0, single buffered']
    %10 = vsyncpa [#allocation3], 0
    %11 = vsyncpa [#allocation4], 0
    // Predicated region
    $region2: #{elias_loss.1} parent=1 // pred_check
      _
    $region3: #{elias_loss.1} parent=1 // pred_check_branch
      %13 = sbr.rel (0) target = $region5
    $region4: #{elias_loss.1} parent=1 // pred_region
      _
    $region5: #{elias_loss.1} parent=1 // pred_fallthru
      _
    // Predicated region
    $region6: #{elias_loss.1} parent=1 // pred_check
      _
    $region7: #{elias_loss.1} parent=1 // pred_check_branch
      %15 = sbr.rel (0) target = $region9
    $region8: #{elias_loss.1} parent=1 // pred_region
      %s17 = ssub.s32 128, 128
      %18 = vsyncadd [#allocation3], %s17
      %s20 = sshll.u32 [#allocation2], 4
      %s21 = int_to_ptr.vmem [resolvable:$true] %s20
      %23 = dma.hbm_to_vmem [thread:$0]  %s1, 128, %s21, [#allocation3]
    $region9: #{elias_loss.1} parent=1 // pred_fallthru
      _
    // Predicated region
    $region10: #{elias_loss.1} parent=1 // pred_check
      _
    $region11: #{elias_loss.1} parent=1 // pred_check_branch
      %25 = sbr.rel (0) target = $region13
    $region12: #{elias_loss.1} parent=1 // pred_region
      _
    $region13: #{elias_loss.1} parent=1 // pred_fallthru
      _
    // Predicated region
    $region14: #{elias_loss.1} parent=1 // pred_check
      _
    $region15: #{elias_loss.1} parent=1 // pred_check_branch
      %27 = sbr.rel (0) target = $region17
    $region16: #{elias_loss.1} parent=1 // pred_region
      _
    $region17: #{elias_loss.1} parent=1 // pred_fallthru
      _
    // Predicated region
    $region18: #{elias_loss.1} parent=1 // pred_check
      _
    $region19: #{elias_loss.1} parent=1 // pred_check_branch
      %29 = sbr.rel (0) target = $region21
    $region20: #{elias_loss.1} parent=1 // pred_region
      _
    $region21: #{elias_loss.1} parent=1 // pred_fallthru
      _
    // Predicated region
    $region22: #{elias_loss.1} parent=1 // pred_check
      _
    $region23: #{elias_loss.1} parent=1 // pred_check_branch
      %31 = sbr.rel (0) target = $region25
    $region24: #{elias_loss.1} parent=1 // pred_region
      %32 = dma.done [#allocation3], 128
    $region25: #{elias_loss.1} parent=1 // pred_fallthru
      _
    %v33 = vld [vmem:[%s0] sm:$0xff]
    %v34 = vld [vmem:[#allocation2] sm:$0xff]
    %v35 = vld [vmem:[%s2] sm:$0xff]
    %v36 = vld [vmem:[%s2 + $0x8] sm:$0xff]
    %v37 = vld [vmem:[%s3] sm:$0xff]
    %v38 = vld [vmem:[%s3 + $0x8] sm:$0xff]
    %v39 = vld [vmem:[%s4] sm:$0xff]
    %vm40 = vcmp.lt.s32.totalorder %v37, 1000
    %vm41 = vcmp.lt.s32.totalorder %v38, 1000
    %42 = vset.pattern.permute.xlu0 0
    %43 = vperm.xlu0 %42, %v39
    %v44 = vpop.permute.xlu0 %43
    %vm45 = vcmp.eq.s32.totalorder %v37, %v44
    %vm46 = vcmp.eq.s32.totalorder %v38, %v44
    %vm47 = vcmp.eq.s32.totalorder %v34, %v44
    %48 = vset.pattern.permute.xlu0 8
    %49 = vperm.xlu0 %48, %v39
    %v50 = vpop.permute.xlu0 %49
    %v52 = vsel %vm47, %v50, 0.0
    %53 = vset.pattern.permute.xlu0 1
    %54 = vperm.xlu0 %53, %v39
    %v55 = vpop.permute.xlu0 %54
    %vm56 = vcmp.eq.s32.totalorder %v37, %v55
    %vm57 = vcmp.eq.s32.totalorder %v38, %v55
    %vm58 = vcmp.eq.s32.totalorder %v34, %v55
    %vm59 = vmor %vm45, %vm56
    %vm60 = vmor %vm46, %vm57
    %61 = vset.pattern.permute.xlu0 9
    %62 = vperm.xlu0 %61, %v39
    %v63 = vpop.permute.xlu0 %62
    %v65 = vsel %vm58, %v63, %v52
    %66 = vset.pattern.permute.xlu0 2
    %67 = vperm.xlu0 %66, %v39
    %v68 = vpop.permute.xlu0 %67
    %vm69 = vcmp.eq.s32.totalorder %v37, %v68
    %vm70 = vcmp.eq.s32.totalorder %v38, %v68
    %vm71 = vcmp.eq.s32.totalorder %v34, %v68
    %vm72 = vmor %vm59, %vm69
    %vm73 = vmor %vm60, %vm70
    %74 = vset.pattern.permute.xlu0 10
    %75 = vperm.xlu0 %74, %v39
    %v76 = vpop.permute.xlu0 %75
    %v78 = vsel %vm71, %v76, %v65
    %79 = vset.pattern.permute.xlu0 3
    %80 = vperm.xlu0 %79, %v39
    %v81 = vpop.permute.xlu0 %80
    %vm82 = vcmp.eq.s32.totalorder %v37, %v81
    %vm83 = vcmp.eq.s32.totalorder %v38, %v81
    %vm84 = vcmp.eq.s32.totalorder %v34, %v81
    %vm85 = vmor %vm72, %vm82
    %vm86 = vmor %vm73, %vm83
    %87 = vset.pattern.permute.xlu0 11
    %88 = vperm.xlu0 %87, %v39
    %v89 = vpop.permute.xlu0 %88
    %v91 = vsel %vm84, %v89, %v78
    %92 = vset.pattern.permute.xlu0 4
    %93 = vperm.xlu0 %92, %v39
    %v94 = vpop.permute.xlu0 %93
    %vm95 = vcmp.eq.s32.totalorder %v37, %v94
    %vm96 = vcmp.eq.s32.totalorder %v38, %v94
    %vm97 = vcmp.eq.s32.totalorder %v34, %v94
    %vm98 = vmor %vm85, %vm95
    %vm99 = vmor %vm86, %vm96
    %100 = vset.pattern.permute.xlu0 12
    %101 = vperm.xlu0 %100, %v39
    %v102 = vpop.permute.xlu0 %101
    %v104 = vsel %vm97, %v102, %v91
    %105 = vset.pattern.permute.xlu0 5
    %106 = vperm.xlu0 %105, %v39
    %v107 = vpop.permute.xlu0 %106
    %vm108 = vcmp.eq.s32.totalorder %v37, %v107
    %vm109 = vcmp.eq.s32.totalorder %v38, %v107
    %vm110 = vcmp.eq.s32.totalorder %v34, %v107
    %vm111 = vmor %vm98, %vm108
    %vm112 = vmor %vm99, %vm109
    %113 = vset.pattern.permute.xlu0 13
    %114 = vperm.xlu0 %113, %v39
    %v115 = vpop.permute.xlu0 %114
    %v117 = vsel %vm110, %v115, %v104
    %118 = vset.pattern.permute.xlu0 6
    %119 = vperm.xlu0 %118, %v39
    %v120 = vpop.permute.xlu0 %119
    %vm121 = vcmp.eq.s32.totalorder %v37, %v120
    %vm122 = vcmp.eq.s32.totalorder %v38, %v120
    %vm123 = vcmp.eq.s32.totalorder %v34, %v120
    %vm124 = vmor %vm111, %vm121
    %vm125 = vmor %vm112, %vm122
    %126 = vset.pattern.permute.xlu0 14
    %127 = vperm.xlu0 %126, %v39
    %v128 = vpop.permute.xlu0 %127
    %v130 = vsel %vm123, %v128, %v117
    %131 = vset.pattern.permute.xlu0 7
    %132 = vperm.xlu0 %131, %v39
    %v133 = vpop.permute.xlu0 %132
    %vm134 = vcmp.eq.s32.totalorder %v37, %v133
    %vm135 = vcmp.eq.s32.totalorder %v38, %v133
    %vm136 = vcmp.eq.s32.totalorder %v34, %v133
    %vm137 = vmor %vm124, %vm134
    %vm138 = vmor %vm125, %vm135
    %139 = vset.pattern.permute.xlu0 15
    %140 = vperm.xlu0 %139, %v39
    %v141 = vpop.permute.xlu0 %140
    %v143 = vsel %vm136, %v141, %v130
    %vm144 = vmand %vm137, %vm40
    %vm145 = vmand %vm138, %vm41
    %v146 = vlog2.pop %v33
    %v147 = vmul.f32 %v146, 0.6931472
    %v148 = vmax.f32 %v147, -100.0
    %v149 = vsub.f32 1.0, %v33
    %v150 = vlog2.pop %v149
    %v151 = vmul.f32 %v150, 0.6931472
    %v152 = vmax.f32 %v151, -100.0
    %v153 = vmul.f32 %v143, %v148
    %v154 = vsub.f32 1.0, %v143
    %v155 = vmul.f32 %v154, %v152
    %v156 = vadd.f32 %v153, %v155
    %v157 = vsub.f32 0.0, %v156
    %v158 = vmul.f32 %v157, 0.0009765625
    %v159 = vsel %vm144, 1.0, 0.0
    %v160 = vsel %vm145, 1.0, 0.0
    %163 = vrot.lane.b32.xlu0 %v159, 1
    %v164 = vpop.permute.xlu0 %163
    %165 = vrot.lane.b32.xlu0 %v160, 1
    %v166 = vpop.permute.xlu0 %165
    %vm167 = vcmask 7168
    %v168 = vsel %vm167, %v164, %v166
    %v171 = vsel %vm167, 0.0, %v164
    %v172 = vadd.f32 %v159, %v171
    %v173 = vadd.f32 %v160, %v168
    %176 = vrot.lane.b32.xlu0 %v172, 2
    %v177 = vpop.permute.xlu0 %176
    %178 = vrot.lane.b32.xlu0 %v173, 2
    %v179 = vpop.permute.xlu0 %178
    %vm180 = vcmask 15360
    %v181 = vsel %vm180, %v177, %v179
    %v184 = vsel %vm180, 0.0, %v177
    %v185 = vadd.f32 %v172, %v184
    %v186 = vadd.f32 %v173, %v181
    %189 = vrot.lane.b32.xlu0 %v185, 4
    %v190 = vpop.permute.xlu0 %189
    %191 = vrot.lane.b32.xlu0 %v186, 4
    %v192 = vpop.permute.xlu0 %191
    %vm193 = vcmask 31744
    %v194 = vsel %vm193, %v190, %v192
    %v197 = vsel %vm193, 0.0, %v190
    %v198 = vadd.f32 %v185, %v197
    %v199 = vadd.f32 %v186, %v194
    %202 = vrot.lane.b32.xlu0 %v198, 8
    %v203 = vpop.permute.xlu0 %202
    %204 = vrot.lane.b32.xlu0 %v199, 8
    %v205 = vpop.permute.xlu0 %204
    %vm206 = vcmask 64512
    %v207 = vsel %vm206, %v203, %v205
    %v210 = vsel %vm206, 0.0, %v203
    %v211 = vadd.f32 %v198, %v210
    %v212 = vadd.f32 %v199, %v207
    %215 = vrot.lane.b32.xlu0 %v211, 16
    %v216 = vpop.permute.xlu0 %215
    %217 = vrot.lane.b32.xlu0 %v212, 16
    %v218 = vpop.permute.xlu0 %217
    %vm219 = vcmask 130048
    %v220 = vsel %vm219, %v216, %v218
    %v223 = vsel %vm219, 0.0, %v216
    %v224 = vadd.f32 %v211, %v223
    %v225 = vadd.f32 %v212, %v220
    %228 = vrot.lane.b32.xlu0 %v224, 32
    %v229 = vpop.permute.xlu0 %228
    %230 = vrot.lane.b32.xlu0 %v225, 32
    %v231 = vpop.permute.xlu0 %230
    %vm232 = vcmask 261120
    %v233 = vsel %vm232, %v229, %v231
    %v236 = vsel %vm232, 0.0, %v229
    %v237 = vadd.f32 %v224, %v236
    %v238 = vadd.f32 %v225, %v233
    %241 = vrot.lane.b32.xlu0 %v237, 64
    %v242 = vpop.permute.xlu0 %241
    %243 = vrot.lane.b32.xlu0 %v238, 64
    %v244 = vpop.permute.xlu0 %243
    %vm245 = vcmask 523264
    %v246 = vsel %vm245, %v242, %v244
    %v249 = vsel %vm245, 0.0, %v242
    %v250 = vadd.f32 %v237, %v249
    %v251 = vadd.f32 %v238, %v246
    %v252 = vadd.f32 %v250, 0.0
    %v253 = vadd.f32 %v251, %v250
    %vm254 = vcmp.le.f32.partialorder %v252, 8.0
    %vm255 = vcmp.le.f32.partialorder %v253, 8.0
    %vm256 = vmand %vm144, %vm254
    %vm257 = vmand %vm145, %vm255
    %v258 = vlog2.pop %v35
    %v259 = vmul.f32 %v258, 0.6931472
    %v260 = vlog2.pop %v36
    %v261 = vmul.f32 %v260, 0.6931472
    %v262 = vmax.f32 %v259, -100.0
    %v263 = vmax.f32 %v261, -100.0
    %v264 = vsel %vm256, %v262, 0.0
    %v265 = vsel %vm257, %v263, 0.0
    %v266 = vmul.f32 %v264, -0.0078125
    %v267 = vmul.f32 %v265, -0.0078125
    %268 = vadd.xlane.f32.xlu0 %v158
    %v269 = vpop.xlane.xlu0 %268
    %v270 = vrot.slane %v269, 4
    %v271 = vadd.f32 %v269, %v270
    %v272 = vrot.slane %v271, 2
    %v273 = vadd.f32 %v271, %v272
    %v274 = vrot.slane %v273, 1
    %v275 = vadd.f32 %v273, %v274
    %s276 = vtos %v275
    %v277 = vadd.f32 %v266, %v267
    %278 = vadd.xlane.f32.xlu0 %v277
    %v279 = vpop.xlane.xlu0 %278
    %v280 = vrot.slane %v279, 4
    %v281 = vadd.f32 %v279, %v280
    %v282 = vrot.slane %v281, 2
    %v283 = vadd.f32 %v281, %v282
    %v284 = vrot.slane %v283, 1
    %v285 = vadd.f32 %v283, %v284
    %s286 = vtos %v285
    %s287 = sadd.f32 %s276, %s286
    %v288 = vstv %s287
    %vm289 = vcmask 0
    %290 = vst.msk [vmem:[#allocation5] sm:$0x1] %vm289, %v288
    // Predicated region
    $region26: #{elias_loss.1} parent=1 // pred_check
      _
    $region27: #{elias_loss.1} parent=1 // pred_check_branch
      %292 = sbr.rel (0) target = $region29
    $region28: #{elias_loss.1} parent=1 // pred_region
      %s294 = ssub.s32 16, 16
      %295 = vsyncadd [#allocation4], %s294
      %s297 = sshll.u32 [#allocation5], 4
      %s298 = int_to_ptr.vmem [resolvable:$true] %s297
      %300 = dma.vmem_to_hbm [thread:$0]  %s298, 16, %s5, [#allocation4]
    $region29: #{elias_loss.1} parent=1 // pred_fallthru
      _
    // Predicated region
    $region30: #{elias_loss.1} parent=1 // pred_check
      _
    $region31: #{elias_loss.1} parent=1 // pred_check_branch
      %302 = sbr.rel (0) target = $region33
    $region32: #{elias_loss.1} parent=1 // pred_region
      %303 = dma.done [#allocation4], 16
    $region33: #{elias_loss.1} parent=1 // pred_fallthru
      _
    %304 = vsyncpa [#allocation3], 1
    %305 = vsyncpa [#allocation4], 1

</llo_original>
